<compile_context>
chip_gen: v7x
topology: tpu7x:2x2x1
jax: 0.10.0
libtpu: 0.0.40
codegen_flags: <defaults>
</compile_context>

<pallas_src>
import functools

import jax
import jax.numpy as jnp
import numpy as np
from jax.experimental import pallas as pl
from jax.experimental.pallas import tpu as pltpu

_BN_EPS = 1e-5


# --------------------------------------------------------------------------- #
# Hardware-aware sizing
# --------------------------------------------------------------------------- #
def _vmem_budget():
    """Returns (vmem_limit_bytes, tile_budget_bytes), generation-aware.

    v5e/v6e have 128 MiB VMEM per TensorCore, v7x only 64 MiB.  The fallback
    (64 MiB physical) is the conservative choice and is correct everywhere.
    """
    cap = 64 * 1024 * 1024
    try:
        info = pltpu.get_tpu_info()
        cap = int(getattr(info, "vmem_capacity_bytes", cap) or cap)
    except Exception:
        pass
    vmem_limit = min(int(cap * 0.75), 100 * 1024 * 1024)   # 48 MiB v7x, 96 MiB v5e/v6e
    tile_budget = int(vmem_limit * 0.8)                    # headroom for weights/sems/misc
    return vmem_limit, tile_budget


def _pick_tile(hw, layer_dims, stream_bytes, final_bytes, budget,
               min_tile=512, max_tile=32768):
    """Largest 128-aligned lane tile whose per-step VMEM footprint fits `budget`.

    Per-lane footprint (worst applied layer): double-buffered input block +
    double-buffered output block + the f32 (Cout, tile) matmul intermediate
    and one f32 temp.  Capped at `max_tile` lanes and at the 128-padded extent.
    """
    max_bpl = 1
    for cin, cout, is_last in layer_dims:
        out_b = final_bytes if is_last else stream_bytes
        bpl = 2 * cin * stream_bytes + 2 * cout * out_b + 2 * cout * 4
        max_bpl = max(max_bpl, bpl)
    tile = (budget // max_bpl) // 128 * 128
    tile = max(min(tile, max_tile), min_tile)
    hw_pad128 = -(-hw // 128) * 128
    return max(128, min(tile, hw_pad128))


# --------------------------------------------------------------------------- #
# Kernels
# --------------------------------------------------------------------------- #
def _input_moments_kernel(x_ref, sx_ref, s_ref):
    """Layer-0 input statistics: per-batch-slab Sum(x) and Gram x @ x^T.

    x_ref:  (1, Cin, T)    activation tile (channels on sublanes, lanes = points)
    sx_ref: (1, Cin, 1)    resident per-N accumulator
    s_ref:  (1, Cin, Cin)  resident per-N accumulator
    Zero lane-padding contributes nothing, so no tail mask is needed here.
    """
    @pl.when(pl.program_id(1) == 0)
    def _init():
        sx_ref[...] = jnp.zeros_like(sx_ref)
        s_ref[...] = jnp.zeros_like(s_ref)

    x = x_ref[0]                                                     # (Cin, T)
    sx_ref[0] += jnp.sum(x.astype(jnp.float32), axis=-1, keepdims=True)
    s_ref[0] += jax.lax.dot_general(                                 # (Cin, Cin), K = T on MXU
        x, x, (((1,), (1,)), ((), ())), preferred_element_type=jnp.float32)


def _apply_kernel(x_ref, w_ref, scale_ref, shift_ref, o_ref):
    """Last applied layer: y = W @ x, fused BN affine (one FMA) + ReLU, lane-dense store."""
    x = x_ref[0]                                                     # (Cin, T)
    y = jnp.dot(w_ref[...], x, preferred_element_type=jnp.float32)   # (Cout, T)
    o_ref[0] = jnp.maximum(y * scale_ref[...] + shift_ref[...], 0.0).astype(o_ref.dtype)


def _apply_stats_kernel(x_ref, w_ref, scale_ref, shift_ref,
                        o_ref, sx_ref, s_ref, *, hw, tile, masked):
    """Apply layer AND accumulate the NEXT layer's input moments (Sum, Gram)."""
    @pl.when(pl.program_id(1) == 0)
    def _init():
        sx_ref[...] = jnp.zeros_like(sx_ref)
        s_ref[...] = jnp.zeros_like(s_ref)

    x = x_ref[0]                                                     # (Cin, T)
    y = jnp.dot(w_ref[...], x, preferred_element_type=jnp.float32)   # (Cout, T)
    out = jnp.maximum(y * scale_ref[...] + shift_ref[...], 0.0)
    if masked:
        # Zero the lane-padded tail so both the stored activation and the fused
        # statistics stay exact (only generated when H*W % tile != 0).
        lane = (jax.lax.broadcasted_iota(jnp.int32, (1, tile), 1)
                + pl.program_id(1) * tile)
        out = jnp.where(lane < hw, out, 0.0)
    out_q = out.astype(o_ref.dtype)
    o_ref[0] = out_q
    sx_ref[0] += jnp.sum(out, axis=-1, keepdims=True)
    s_ref[0] += jax.lax.dot_general(                                 # out @ out^T, K = T on MXU
        out_q, out_q, (((1,), (1,)), ((), ())), preferred_element_type=jnp.float32)


# --------------------------------------------------------------------------- #
# Host-side folds and pallas_call wrappers
# --------------------------------------------------------------------------- #
def _fold_bn(w, gamma, beta, sx, s_gram, count):
    """Fold batch statistics of y = W @ x (+b) and the BN affine into scale/shift.

    Conv bias never appears: BN's batch-mean subtraction cancels it exactly.
    """
    w32 = w.astype(jnp.float32)
    sum_y = w32 @ sx                                                  # (Cout, 1)
    sumsq_y = jnp.sum((w32 @ s_gram) * w32, axis=1, keepdims=True)    # diag(W S W^T)
    cnt = jnp.float32(count)
    mean = sum_y / cnt
    # E[y^2] - E[y]^2 in f32 (clamped); a Welford / per-tile-centered combine is
    # the upgrade path if |mean| >> std at very large N*H*W.
    var = jnp.maximum(sumsq_y / cnt - mean * mean, 0.0)
    scale = gamma * jax.lax.rsqrt(var + _BN_EPS)
    shift = beta - mean * scale
    return scale, shift


def _input_moments(x, *, tile, vmem_limit):
    """Standalone moments pass — used only for layer 0's input."""
    N, Cin, HWp = x.shape
    grid = (N, HWp // tile)
    sx_p, s_p = pl.pallas_call(
        _input_moments_kernel,
        out_shape=(jax.ShapeDtypeStruct((N, Cin, 1), jnp.float32),
                   jax.ShapeDtypeStruct((N, Cin, Cin), jnp.float32)),
        grid=grid,
        in_specs=[pl.BlockSpec((1, Cin, tile), lambda n, t: (n, 0, t))],
        out_specs=(pl.BlockSpec((1, Cin, 1), lambda n, t: (n, 0, 0)),
                   pl.BlockSpec((1, Cin, Cin), lambda n, t: (n, 0, 0))),
        compiler_params=pltpu.CompilerParams(
            dimension_semantics=("parallel", "arbitrary"),
            vmem_limit_bytes=vmem_limit),
    )(x)
    return jnp.sum(sx_p, axis=0), jnp.sum(s_p, axis=0)    # reduce per-N partials


def _apply_layer(x, w, scale, shift, *, tile, hw, out_dtype, with_stats, vmem_limit):
    """One SharedMLP layer on (N, Cin, HW_pad) -> (N, Cout, HW_pad) (+ next-layer stats)."""
    N, Cin, HWp = x.shape
    Cout = w.shape[0]
    grid = (N, HWp // tile)

    x_spec = pl.BlockSpec((1, Cin, tile), lambda n, t: (n, 0, t))
    w_spec = pl.BlockSpec((Cout, Cin), lambda n, t: (0, 0))
    v_spec = pl.BlockSpec((Cout, 1), lambda n, t: (0, 0))
    o_spec = pl.BlockSpec((1, Cout, tile), lambda n, t: (n, 0, t))

    if not with_stats:
        out = pl.pallas_call(
            _apply_kernel,
            out_shape=jax.ShapeDtypeStruct((N, Cout, HWp), out_dtype),
            grid=grid,
            in_specs=[x_spec, w_spec, v_spec, v_spec],
            out_specs=o_spec,
            compiler_params=pltpu.CompilerParams(
                dimension_semantics=("parallel", "parallel"),
                vmem_limit_bytes=vmem_limit),
        )(x, w, scale, shift)
        return out, None, None

    kernel = functools.partial(_apply_stats_kernel, hw=hw, tile=tile,
                               masked=(HWp != hw))
    out, sx_p, s_p = pl.pallas_call(
        kernel,
        out_shape=(jax.ShapeDtypeStruct((N, Cout, HWp), out_dtype),
                   jax.ShapeDtypeStruct((N, Cout, 1), jnp.float32),
                   jax.ShapeDtypeStruct((N, Cout, Cout), jnp.float32)),
        grid=grid,
        in_specs=[x_spec, w_spec, v_spec, v_spec],
        out_specs=(o_spec,
                   pl.BlockSpec((1, Cout, 1), lambda n, t: (n, 0, 0)),
                   pl.BlockSpec((1, Cout, Cout), lambda n, t: (n, 0, 0))),
        compiler_params=pltpu.CompilerParams(
            dimension_semantics=("parallel", "arbitrary"),
            vmem_limit_bytes=vmem_limit),
    )(x, w, scale, shift)
    return out, jnp.sum(sx_p, axis=0), jnp.sum(s_p, axis=0)


def shared_mlp_forward(x_nchw, params, *, stream_dtype=jnp.bfloat16):
    """Replicates SharedMLP.forward.

    x_nchw: (N, C0, H, W) float32
    params: one dict per conv layer with 'w' (Cout, Cin), 'b' (unused — cancelled
            by training-mode BN), 'gamma' (Cout, 1), 'beta' (Cout, 1).  The
            forward applies only params[:-1] (the last conv layer is skipped,
            exactly as in the PyTorch code).
    stream_dtype: dtype of inter-layer activations (bf16 halves HBM traffic);
            the final output is always produced in the input dtype.
    """
    N, C, H, W = x_nchw.shape
    HW = H * W
    applied = params[:-1]
    if not applied:
        return x_nchw
    final_dtype = x_nchw.dtype

    vmem_limit, budget = _vmem_budget()
    sb = jnp.dtype(stream_dtype).itemsize
    fb = jnp.dtype(final_dtype).itemsize
    layer_dims = [(l["w"].shape[1], l["w"].shape[0], i == len(applied) - 1)
                  for i, l in enumerate(applied)]
    tile = _pick_tile(HW, layer_dims, sb, fb, budget)
    n_tiles = -(-HW // tile)
    HW_pad = n_tiles * tile

    # Single up-front cast (keeps every matmul on the single-pass bf16 MXU path)
    # and zero lane-padding to a tile multiple (zeros are stats-neutral).
    x = x_nchw.reshape(N, C, HW).astype(stream_dtype)
    if HW_pad != HW:
        x = jnp.pad(x, ((0, 0), (0, 0), (0, HW_pad - HW)))

    # The ONLY standalone statistics pass: layer 0's input moments.  Every
    # later layer's moments are produced for free by the fused apply kernel.
    sx, s_gram = _input_moments(x, tile=tile, vmem_limit=vmem_limit)

    count = N * HW                       # true sample count (padding excluded)
    for i, layer in enumerate(applied):
        is_last = i == len(applied) - 1
        scale, shift = _fold_bn(layer["w"], layer["gamma"], layer["beta"],
                                sx, s_gram, count)
        x, sx, s_gram = _apply_layer(
            x, layer["w"].astype(x.dtype), scale, shift,
            tile=tile, hw=HW,
            out_dtype=final_dtype if is_last else stream_dtype,
            with_stats=not is_last, vmem_limit=vmem_limit)

    if HW_pad != HW:
        x = x[:, :, :HW]
    return x.reshape(N, x.shape[1], H, W)   # already NCHW-ordered; pure reshape


# --------------------------------------------------------------------------- #
# Parameters + pure-JAX reference
# --------------------------------------------------------------------------- #
def init_params(key, mlp_spec):
    """Deterministic synthetic parameters matching SharedMLP.__init__ shapes."""
    params = []
    for i in range(len(mlp_spec) - 1):
        cin, cout = mlp_spec[i], mlp_spec[i + 1]
        key, kw, kb, kg, kbt = jax.random.split(key, 5)
        params.append({
            "w": jax.random.normal(kw, (cout, cin), jnp.float32) * 0.1,
            # Conv2d(bias=True) bias exists in the module, but BatchNorm's
            # batch-mean subtraction cancels it exactly, so the kernels never
            # read it (the reference below includes it to prove this).
            "b": jax.random.normal(kb, (cout, 1), jnp.float32) * 0.1,
            "gamma": 1.0 + 0.1 * jax.random.normal(kg, (cout, 1), jnp.float32),
            "beta": 0.1 * jax.random.normal(kbt, (cout, 1), jnp.float32),
        })
    return params
    # NOTE: self.conv1 = nn.Conv2d(3, 3, (1, 1)) in __init__ is never used in
    # forward, so it contributes no parameters here.


def _reference(x_nchw, params):
    """Pure-JAX reference mirroring the PyTorch forward (bias included)."""
    x = x_nchw
    for layer in params[:-1]:
        w, b = layer["w"], layer["b"]
        gamma, beta = layer["gamma"], layer["beta"]
        cout = w.shape[0]
        y = jnp.einsum("oc,nchw->nohw", w, x) + b.reshape(1, cout, 1, 1)
        mean = jnp.mean(y, axis=(0, 2, 3), keepdims=True)
        var = jnp.var(y, axis=(0, 2, 3), keepdims=True)   # biased, like BN training
        y = (y - mean) * jax.lax.rsqrt(var + _BN_EPS)
        y = y * gamma.reshape(1, cout, 1, 1) + beta.reshape(1, cout, 1, 1)
        x = jnp.maximum(y, 0.0)
    return x


if __name__ == "__main__":
    # Small shapes consistent with the module: NCHW input, mlp_spec channels.
    mlp_spec = [4, 32, 16, 8]    # 3 conv layers; forward applies only the first 2
    N, H, W = 2, 16, 16

    key = jax.random.PRNGKey(0)
    key, kx, kx2 = jax.random.split(key, 3)
    x = jax.random.normal(kx, (N, mlp_spec[0], H, W), jnp.float32)
    params = init_params(key, mlp_spec)

    out = jax.block_until_ready(shared_mlp_forward(x, params))              # bf16 streaming
    out_f32 = jax.block_until_ready(
        shared_mlp_forward(x, params, stream_dtype=jnp.float32))            # f32 path
    ref = jax.block_until_ready(_reference(x, params))

    expected_cout = mlp_spec[-2]   # last conv layer is skipped in forward
    assert out.shape == (N, expected_cout, H, W), out.shape
    assert out.dtype == x.dtype
    assert bool(jnp.all(jnp.isfinite(out)))
    assert bool(jnp.all(out >= 0.0))     # ReLU output

    np.testing.assert_allclose(np.asarray(out_f32), np.asarray(ref),
                               rtol=2e-2, atol=2e-2)
    np.testing.assert_allclose(np.asarray(out), np.asarray(ref),
                               rtol=1e-1, atol=1e-1)

    # Non-128-divisible spatial extent exercises the zero-padded / masked tail.
    x2 = jax.random.normal(kx2, (N, mlp_spec[0], 5, 5), jnp.float32)
    out2 = jax.block_until_ready(
        shared_mlp_forward(x2, params, stream_dtype=jnp.float32))
    ref2 = jax.block_until_ready(_reference(x2, params))
    assert out2.shape == (N, expected_cout, 5, 5), out2.shape
    np.testing.assert_allclose(np.asarray(out2), np.asarray(ref2),
                               rtol=2e-2, atol=2e-2)

    print("KERNEL_OK")
</pallas_src>

<mosaic_0001>
module attributes {stable_mosaic.version = 11 : i64} {
  func.func @_input_moments_kernel(%arg0: i32, %arg1: i32, %arg2: memref<1x4x256xbf16, #tpu.memory_space<vmem>>, %arg3: memref<1x4x1xf32, #tpu.memory_space<vmem>>, %arg4: memref<1x4x4xf32, #tpu.memory_space<vmem>>) attributes {dimension_semantics = [#tpu.dimension_semantics<parallel>, #tpu.dimension_semantics<arbitrary>], iteration_bounds = array<i64: 2, 1>, scalar_prefetch = 0 : i64, scratch_operands = 0 : i64, tpu.core_type = #tpu.core_type<tc>, window_params = [{transform_indices = @transform_0, window_bounds = array<i64: 1, 4, 256>}, {transform_indices = @transform_1, window_bounds = array<i64: 1, 4, 1>}, {transform_indices = @transform_2, window_bounds = array<i64: 1, 4, 4>}]} {
    %c0_i32 = arith.constant 0 : i32
    %0 = arith.cmpi eq, %arg1, %c0_i32 : i32
    %1 = arith.extui %0 : i1 to i32
    %c0_i32_0 = arith.constant 0 : i32
    %2 = arith.cmpi ne, %1, %c0_i32_0 : i32
    scf.if %2 {
      %cst_16 = arith.constant 0.000000e+00 : f32
      %21 = vector.broadcast %cst_16 : f32 to vector<1x4x1xf32>
      %c0_17 = arith.constant 0 : index
      %c0_18 = arith.constant 0 : index
      %c0_19 = arith.constant 0 : index
      %22 = vector.load %arg3[%c0_17, %c0_18, %c0_19] : memref<1x4x1xf32, #tpu.memory_space<vmem>>, vector<1x4x1xf32>
      tpu.vector_store %arg3[%c0_17, %c0_18, %c0_19], %21 {strides = array<i32>} : memref<1x4x1xf32, #tpu.memory_space<vmem>>, vector<1x4x1xf32>,
      %cst_20 = arith.constant 0.000000e+00 : f32
      %23 = vector.broadcast %cst_20 : f32 to vector<1x4x4xf32>
      %c0_21 = arith.constant 0 : index
      %c0_22 = arith.constant 0 : index
      %c0_23 = arith.constant 0 : index
      %24 = vector.load %arg4[%c0_21, %c0_22, %c0_23] : memref<1x4x4xf32, #tpu.memory_space<vmem>>, vector<1x4x4xf32>
      tpu.vector_store %arg4[%c0_21, %c0_22, %c0_23], %23 {strides = array<i32>} : memref<1x4x4xf32, #tpu.memory_space<vmem>>, vector<1x4x4xf32>,
    } else {
    }
    %c0 = arith.constant 0 : index
    %c0_1 = arith.constant 0 : index
    %c0_2 = arith.constant 0 : index
    %3 = vector.load %arg2[%c0, %c0_1, %c0_2] : memref<1x4x256xbf16, #tpu.memory_space<vmem>>, vector<1x4x256xbf16>
    %4 = vector.shape_cast %3 : vector<1x4x256xbf16> to vector<4x256xbf16>
    %c0_3 = arith.constant 0 : index
    %c0_4 = arith.constant 0 : index
    %c0_5 = arith.constant 0 : index
    %5 = vector.load %arg3[%c0_3, %c0_4, %c0_5] : memref<1x4x1xf32, #tpu.memory_space<vmem>>, vector<1x4x1xf32>
    %6 = vector.shape_cast %5 : vector<1x4x1xf32> to vector<4x1xf32>
    %7 = arith.extf %4 : vector<4x256xbf16> to vector<4x256xf32>
    %cst = arith.constant dense<0.000000e+00> : vector<4xf32>
    %8 = vector.multi_reduction <add>, %7, %cst [1] : vector<4x256xf32> to vector<4xf32>
    %9 = vector.shape_cast %8 : vector<4xf32> to vector<4x1xf32>
    %10 = arith.addf %6, %9 : vector<4x1xf32>
    %c0_6 = arith.constant 0 : index
    %c0_7 = arith.constant 0 : index
    %c0_8 = arith.constant 0 : index
    %11 = vector.load %arg3[%c0_6, %c0_7, %c0_8] : memref<1x4x1xf32, #tpu.memory_space<vmem>>, vector<1x4x1xf32>
    %12 = vector.shape_cast %11 : vector<1x4x1xf32> to vector<4x1xf32>
    %13 = vector.shape_cast %10 : vector<4x1xf32> to vector<1x4x1xf32>
    tpu.vector_store %arg3[%c0_6, %c0_7, %c0_8], %13 {strides = array<i32>} : memref<1x4x1xf32, #tpu.memory_space<vmem>>, vector<1x4x1xf32>,
    %c0_9 = arith.constant 0 : index
    %c0_10 = arith.constant 0 : index
    %c0_11 = arith.constant 0 : index
    %14 = vector.load %arg4[%c0_9, %c0_10, %c0_11] : memref<1x4x4xf32, #tpu.memory_space<vmem>>, vector<1x4x4xf32>
    %15 = vector.shape_cast %14 : vector<1x4x4xf32> to vector<4x4xf32>
    %cst_12 = arith.constant dense<0.000000e+00> : vector<4x4xf32>
    %16 = tpu.matmul %4, %4, %cst_12 {dimension_numbers = #tpu.dot_dimension_numbers<[1], [1], [0], [0], [0, 0, 1, 0], [], []>} : vector<4x256xbf16>, vector<4x256xbf16>, vector<4x4xf32> -> vector<4x4xf32>
    %17 = arith.addf %15, %16 : vector<4x4xf32>
    %c0_13 = arith.constant 0 : index
    %c0_14 = arith.constant 0 : index
    %c0_15 = arith.constant 0 : index
    %18 = vector.load %arg4[%c0_13, %c0_14, %c0_15] : memref<1x4x4xf32, #tpu.memory_space<vmem>>, vector<1x4x4xf32>
    %19 = vector.shape_cast %18 : vector<1x4x4xf32> to vector<4x4xf32>
    %20 = vector.shape_cast %17 : vector<4x4xf32> to vector<1x4x4xf32>
    tpu.vector_store %arg4[%c0_13, %c0_14, %c0_15], %20 {strides = array<i32>} : memref<1x4x4xf32, #tpu.memory_space<vmem>>, vector<1x4x4xf32>,
    return
  }
  func.func @transform_0(%arg0: i32, %arg1: i32) -> (i32, i32, i32) {
    %c0_i32 = arith.constant 0 : i32
    %c0_i32_0 = arith.constant 0 : i32
    return %arg0, %c0_i32, %arg1 : i32, i32, i32
  }
  func.func @transform_1(%arg0: i32, %arg1: i32) -> (i32, i32, i32) {
    %c0_i32 = arith.constant 0 : i32
    %c0_i32_0 = arith.constant 0 : i32
    %c0_i32_1 = arith.constant 0 : i32
    return %arg0, %c0_i32, %c0_i32_0 : i32, i32, i32
  }
  func.func @transform_2(%arg0: i32, %arg1: i32) -> (i32, i32, i32) {
    %c0_i32 = arith.constant 0 : i32
    %c0_i32_0 = arith.constant 0 : i32
    %c0_i32_1 = arith.constant 0 : i32
    return %arg0, %c0_i32, %c0_i32_0 : i32, i32, i32
  }
}

</mosaic_0001>

<llo_original>
// kernel: tpu_custom_call.1
$region0: #{tpu_custom_call.1}
  #allocation0 [shape = 'u32[]', space=smem, size = 0x4, offset = 0x4, fixed_abs, tag = 'smem constant byte address 0x4 - core index']
  #allocation1 [shape = 'u32[144,128]{1,0:T(1,128)}', space=vmem, size = 0x12000, scoped, tag = 'internal scratch']
  %s0 = inlined_call_operand.hbm [shape: bf16[2,4,256], index: 0, kind: input, shape index: {}]
  %s1 = inlined_call_operand.vmem [shape: f32[2,4,1], index: 1, kind: output, shape index: {0}]
  %s2 = inlined_call_operand.hbm [shape: f32[2,4,4], index: 2, kind: output, shape index: {1}]
  %3 = xla_tuple %s1, %s2
  %s4 = sld [smem:[#allocation0]]
  $region53: #{tpu_custom_call.1} parent=0
    _
  %s6 = ssub.s32 1, %s4
  %s7 = scalar_select 0, %s6, %s4
  $region1: #{tpu_custom_call.1} parent=0
    #allocation2 [shape = 'u8[4096]{0}', space=vmem, size = 0x1000, scoped, tag = 'input window, operand 0']
    #allocation3 [shape = 's32[2]{0}', space=sflag, size = 0x8, scoped, tag = 'scoped memory for tpu_custom_call.1']
    #allocation4 [shape = 's32[2]{0}', space=sflag, size = 0x8, scoped, tag = 'scoped memory for tpu_custom_call.1']
    #allocation5 [shape = 'u8[4096]{0}', space=vmem, size = 0x1000, scoped, tag = 'output window, operand 1']
    %8 = vsyncpa [#allocation3], 0
    %s9 = scalar_lea.sflag [#allocation3], 1
    %10 = vsyncpa %s9, 0
    %11 = vsyncpa [#allocation4], 0
    %s12 = scalar_lea.sflag [#allocation4], 1
    %13 = vsyncpa %s12, 0
    loop: start=0, step=1, limit=4
    $region2: #{tpu_custom_call.1} parent=1 // loop_pre_header
      _
    $region3: #{tpu_custom_call.1} parent=1 // loop_header
      %s15 = sphi 0, %s19
      %p16 = scmp.ge.s32.totalorder %s15, 4
      %s22 = sphi 0, %s34
      %s23 = sphi 0, %s30
      %s24 = sphi 0, %s22
      %s25 = sphi 0, %s23
      %s26 = sphi 0, %s24
      %s27 = sphi 0, %s25
      %s39 = sphi 0, %s41
      %s42 = sphi 0, %s39
      %s43 = sphi 0, %s42
      %s59 = sphi 0, %s43
      %s65 = sphi 0, %s67
      %s68 = sphi 0, %s65
      %s69 = sphi 0, %s68
      %s85 = sphi 0, %s69
      %s91 = sphi 0, %s93
      %s94 = sphi 0, %s91
      %s95 = sphi 0, %s94
      %s111 = sphi 0, %s95
    $region4: #{tpu_custom_call.1} parent=1 // loop_header_branch
      %18 = sbr.rel (%p16) target = $region8
    $region5: #{tpu_custom_call.1} parent=1 // loop_body
      %s20 = ssub.s32 %s15, 1
      %s21 = ssub.s32 %s15, 2
      %s28 = sadd.s32 1, %s23
      %p29 = scmp.ge.s32.totalorder %s28, 1
      %s30 = scalar_select %p29, 0, %s28
      %s31 = sadd.s32 1, %s22
      %s32 = scalar_select %p29, %s31, %s22
      %p33 = scmp.ge.s32.totalorder %s32, 2
      %s34 = scalar_select %p33, 0, %s32
      %s35 = ssub.s32 %s22, %s34
      %s36 = ssub.s32 %s23, %s30
      %s37 = sor.u32 %s35, %s36
      %p38 = scmp.eq.s32.totalorder %s37, 0
      %s40 = sadd.s32 %s39, 1
      %s41 = scalar_select %p38, %s39, %s40
      %p44 = pneg %p38
      %p45 = scmp.eq.s32.totalorder %s15, 1
      %p46 = por %p44, %p45
      %p47 = scmp.ne.s32.totalorder %s39, %s42
      %p48 = scmp.eq.s32.totalorder %s15, 0
      %p49 = por %p47, %p48
      %p50 = scmp.ne.s32.totalorder %s39, %s42
      %p51 = scmp.eq.s32.totalorder %s20, 1
      %p52 = por %p50, %p51
      %p53 = scmp.ne.s32.totalorder %s42, %s43
      %p54 = scmp.eq.s32.totalorder %s20, 0
      %p55 = por %p53, %p54
      %p56 = scmp.ne.s32.totalorder %s42, %s43
      %p57 = scmp.eq.s32.totalorder %s21, 1
      %p58 = por %p56, %p57
      %p60 = scmp.ne.s32.totalorder %s43, %s59
      %p61 = scmp.eq.s32.totalorder %s21, 0
      %p62 = por %p60, %p61
      %s63 = ssub.s32 %s22, %s34
      %p64 = scmp.eq.s32.totalorder %s63, 0
      %s66 = sadd.s32 %s65, 1
      %s67 = scalar_select %p64, %s65, %s66
      %p70 = pneg %p64
      %p71 = scmp.eq.s32.totalorder %s15, 1
      %p72 = por %p70, %p71
      %p73 = scmp.ne.s32.totalorder %s65, %s68
      %p74 = scmp.eq.s32.totalorder %s15, 0
      %p75 = por %p73, %p74
      %p76 = scmp.ne.s32.totalorder %s65, %s68
      %p77 = scmp.eq.s32.totalorder %s20, 1
      %p78 = por %p76, %p77
      %p79 = scmp.ne.s32.totalorder %s68, %s69
      %p80 = scmp.eq.s32.totalorder %s20, 0
      %p81 = por %p79, %p80
      %p82 = scmp.ne.s32.totalorder %s68, %s69
      %p83 = scmp.eq.s32.totalorder %s21, 1
      %p84 = por %p82, %p83
      %p86 = scmp.ne.s32.totalorder %s69, %s85
      %p87 = scmp.eq.s32.totalorder %s21, 0
      %p88 = por %p86, %p87
      %s89 = ssub.s32 %s22, %s34
      %p90 = scmp.eq.s32.totalorder %s89, 0
      %s92 = sadd.s32 %s91, 1
      %s93 = scalar_select %p90, %s91, %s92
      %p96 = pneg %p90
      %p97 = scmp.eq.s32.totalorder %s15, 1
      %p98 = por %p96, %p97
      %p99 = scmp.ne.s32.totalorder %s91, %s94
      %p100 = scmp.eq.s32.totalorder %s15, 0
      %p101 = por %p99, %p100
      %p102 = scmp.ne.s32.totalorder %s91, %s94
      %p103 = scmp.eq.s32.totalorder %s20, 1
      %p104 = por %p102, %p103
      %p105 = scmp.ne.s32.totalorder %s94, %s95
      %p106 = scmp.eq.s32.totalorder %s20, 0
      %p107 = por %p105, %p106
      %p108 = scmp.ne.s32.totalorder %s94, %s95
      %p109 = scmp.eq.s32.totalorder %s21, 1
      %p110 = por %p108, %p109
      %p112 = scmp.ne.s32.totalorder %s95, %s111
      %p113 = scmp.eq.s32.totalorder %s21, 0
      %p114 = por %p112, %p113
      %p115 = scmp.le.s32.totalorder 1, %s15
      %p116 = scmp.lt.s32.totalorder %s15, 3
      %p117 = pnand %p115, %p116
      %p118 = pneg %p117
      // Predicated region
      $region9: #{tpu_custom_call.1} parent=5 // pred_check
        _
      $region10: #{tpu_custom_call.1} parent=5 // pred_check_branch
        %120 = sbr.rel (%p117) target = $region12
      $region11: #{tpu_custom_call.1} parent=5 // pred_region
        %s121 = ssub.s32 %s15, 1
      $region12: #{tpu_custom_call.1} parent=5 // pred_fallthru
        _
      %p122 = scmp.lt.s32.totalorder %s15, 2
      // Predicated region
      $region13: #{tpu_custom_call.1} parent=5 // pred_check
        %p123 = pneg %p122
      $region14: #{tpu_custom_call.1} parent=5 // pred_check_branch
        %125 = sbr.rel (%p123) target = $region16
      $region15: #{tpu_custom_call.1} parent=5 // pred_region
        // Predicated region
        $region17: #{tpu_custom_call.1} parent=15 // pred_check
          %p126 = pneg %p49
        $region18: #{tpu_custom_call.1} parent=15 // pred_check_branch
          %128 = sbr.rel (%p126) target = $region20
        $region19: #{tpu_custom_call.1} parent=15 // pred_region
          %s129 = sand.u32 %s39, 1
          %s130 = scalar_lea.sflag [#allocation3], %s129
          %s131 = sand.u32 %s39, 1
          %s132 = smul.addr %s131, 4
          %s133 = scalar_lea.vmem [#allocation2], %s132
          %s134 = smul.u32 2, %s23
          %s136 = ssub.s32 64, 64
          %137 = vsyncadd %s130, %s136
          %s138 = smul.addr %s22, 2
          %s139 = sadd.s32 %s134, %s138
          %s140 = smul.addr %s139, 32
          %s141 = scalar_lea.hbm %s0, %s140
          %s143 = sshll.u32 %s133, 4
          %s144 = int_to_ptr.vmem [resolvable:$true] %s143
          %146 = dma.hbm_to_vmem [thread:$0]  %s141, 64, %s144, %s130
        $region20: #{tpu_custom_call.1} parent=15 // pred_fallthru
          _
      $region16: #{tpu_custom_call.1} parent=5 // pred_fallthru
        _
      %p147 = scmp.le.s32.totalorder 1, %s15
      %p148 = scmp.lt.s32.totalorder %s15, 3
      %p149 = pnand %p147, %p148
      %p150 = pneg %p149
      // Predicated region
      $region21: #{tpu_custom_call.1} parent=5 // pred_check
        _
      $region22: #{tpu_custom_call.1} parent=5 // pred_check_branch
        %152 = sbr.rel (%p149) target = $region24
      $region23: #{tpu_custom_call.1} parent=5 // pred_region
        %s153 = ssub.s32 %s15, 1
        %s154 = sand.u32 %s42, 1
        %s155 = scalar_lea.sflag [#allocation3], %s154
        %s156 = sand.u32 %s42, 1
        %s157 = smul.addr %s156, 4
        %s158 = scalar_lea.vmem [#allocation2], %s157
        // Predicated region
        $region25: #{tpu_custom_call.1} parent=23 // pred_check
          %p159 = pneg %p55
        $region26: #{tpu_custom_call.1} parent=23 // pred_check_branch
          %161 = sbr.rel (%p159) target = $region28
        $region27: #{tpu_custom_call.1} parent=23 // pred_region
          %162 = dma.done %s155, 64
        $region28: #{tpu_custom_call.1} parent=23 // pred_fallthru
          _
        %s163 = sand.u32 %s42, 1
        %s164 = scalar_lea.sflag [#allocation3], %s163
        %s165 = sand.u32 %s42, 1
        %s166 = smul.addr %s165, 4
        %s167 = scalar_lea.vmem [#allocation2], %s166
        %p168 = pneg %p55
        %p169 = pneg %p52
        %p170 = pneg %p81
        %p171 = pneg %p78
        %p172 = scmp.lt.s32.totalorder %s24, 1
        %s173 = scalar_select %p172, %s24, 1
        %s174 = smul.addr %s173, 4
        %s175 = scalar_lea.vmem %s1, %s174
        %p176 = pneg %p107
        %p177 = pneg %p104
        %s178 = sand.u32 %s94, 1
        %s179 = scalar_lea.sflag [#allocation4], %s178
        %s180 = sand.u32 %s94, 1
        %s181 = smul.addr %s180, 4
        %s182 = scalar_lea.vmem [#allocation5], %s181
        %s183 = smul.u32 2, %s25
        %p184 = scmp.lt.s32.totalorder %s24, 1
        %s185 = scalar_select %p184, %s24, 1
        %s186 = smul.addr %s185, 4
        %s187 = scalar_lea.vmem %s1, %s186
        %p189 = scmp.eq.s32.totalorder %s25, 0
        // Predicated region
        $region29: #{tpu_custom_call.1} parent=23 // pred_check
          %p190 = pneg %p189
        $region30: #{tpu_custom_call.1} parent=23 // pred_check_branch
          %192 = sbr.rel (%p190) target = $region32
        $region31: #{tpu_custom_call.1} parent=23 // pred_region
          %vm193 = vcmask 3072
          %194 = vst.msk [vmem:[%s187] sm:$0xf] %vm193, 0.0
          %vm195 = vcmask 27648
          %196 = vst.msk [vmem:[%s182] sm:$0xf] %vm195, 0.0
        $region32: #{tpu_custom_call.1} parent=23 // pred_fallthru
          _
        %v197 = vld [vmem:[%s158] sm:$0xf]
        %v198 = vld [vmem:[%s187] sm:$0xf]
        %v199 = vunpack.c.l.bf16 %v197
        %v201 = vcombine.high %v199, %v199
        %vm203 = vcmask 1043456
        %v204 = vsel %vm203, %v199, 0.0
        %v205 = vsel %vm203, %v201, 0.0
        %v206 = vadd.f32 %v204, %v205
        %207 = vadd.xlane.f32.xlu0 %v206
        %v208 = vpop.xlane.xlu0 %207
        %v209 = vadd.f32 %v198, %v208
        %vm210 = vcmask 3072
        %211 = vst.msk [vmem:[%s187] sm:$0xf] %vm210, %v209
        %v212 = vld [vmem:[%s182] sm:$0xf]
        %v215 = vunpack.c.l.s4 1983009808
        %v216 = vunpack.c.0.s8 %v215
        %v217 = vlaneseq
        %v218 = vshrl.u32 %v217, 7
        %v219 = vsub.s32 %v216, %v218
        %v220 = vrot.slane %v197, %v219
        %v221 = vcombine.high %v220, %v220
        %224 = vmatprep.subr.bf16.mxu0 %v221
        %225 = vmatpush1.bf16.xpose.msra.mxu0 %v220
        %226 = vmatprep.subr.bf16.mxu0 0
        %227 = vmatpush1.bf16.xpose.msra.mxu0 0
        %228 = vmatprep.subr.bf16.mxu0 0
        %229 = vmatpush1.bf16.xpose.msra.mxu0 0
        %230 = vmatprep.subr.bf16.mxu0 0
        %231 = vmatpush1.bf16.xpose.msra.mxu0 0
        %232 = vmatprep.subr.bf16.mxu0 0
        %233 = vmatpush1.bf16.xpose.msra.mxu0 0
        %234 = vmatprep.subr.bf16.mxu0 0
        %235 = vmatpush1.bf16.xpose.msra.mxu0 0
        %236 = vmatprep.subr.bf16.mxu0 0
        %237 = vmatpush1.bf16.xpose.msra.mxu0 0
        %238 = vmatprep.subr.bf16.mxu0 0
        %239 = vmatpush1.bf16.xpose.msra.mxu0 0
        %240 = vmatprep.subr.bf16.mxu0 0
        %241 = vmatpush1.bf16.xpose.msra.mxu0 0
        %242 = vmatprep.subr.bf16.mxu0 0
        %243 = vmatpush1.bf16.xpose.msra.mxu0 0
        %244 = vmatprep.subr.bf16.mxu0 0
        %245 = vmatpush1.bf16.xpose.msra.mxu0 0
        %246 = vmatprep.subr.bf16.mxu0 0
        %247 = vmatpush1.bf16.xpose.msra.mxu0 0
        %248 = vmatprep.subr.bf16.mxu0 0
        %249 = vmatpush1.bf16.xpose.msra.mxu0 0
        %250 = vmatprep.subr.bf16.mxu0 0
        %251 = vmatpush1.bf16.xpose.msra.mxu0 0
        %252 = vmatprep.subr.bf16.mxu0 0
        %253 = vmatpush1.bf16.xpose.msra.mxu0 0
        %254 = vmatprep.subr.bf16.mxu0 0
        %255 = vmatpush1.bf16.xpose.msra.mxu0 0
        %256 = vmatprep.mubr.bf16.mxu0 %v221
        %257 = vmatmul.mubr.bf16.gmra.mrb[0].mxu0 %v220
        %v258 = vpop.f32.mrb[0].mxu0
        %v259 = vadd.f32 0.0, %v258
        %v260 = vpop.f32.mrb[0].mxu0
        %v261 = vpop.f32.mrb[0].mxu0
        %v262 = vpop.f32.mrb[0].mxu0
        %263 = vdwg.mxu0
        %v264 = vadd.f32 %v212, %v259
        %vm265 = vcmask 27648
        %266 = vst.msk [vmem:[%s182] sm:$0xf] %vm265, %v264
        %p267 = scmp.lt.s32.totalorder %s24, 1
        %s268 = scalar_select %p267, %s24, 1
        %s269 = smul.addr %s268, 4
        %s270 = scalar_lea.vmem %s1, %s269
        %s271 = sand.u32 %s94, 1
        %s272 = scalar_lea.sflag [#allocation4], %s271
        %s273 = sand.u32 %s94, 1
        %s274 = smul.addr %s273, 4
        %s275 = scalar_lea.vmem [#allocation5], %s274
        // Predicated region
        $region33: #{tpu_custom_call.1} parent=23 // pred_check
          %p276 = pneg %p78
        $region34: #{tpu_custom_call.1} parent=23 // pred_check_branch
          %278 = sbr.rel (%p276) target = $region36
        $region35: #{tpu_custom_call.1} parent=23 // pred_region
          _
        $region36: #{tpu_custom_call.1} parent=23 // pred_fallthru
          _
        // Predicated region
        $region37: #{tpu_custom_call.1} parent=23 // pred_check
          %p279 = pneg %p104
        $region38: #{tpu_custom_call.1} parent=23 // pred_check_branch
          %281 = sbr.rel (%p279) target = $region40
        $region39: #{tpu_custom_call.1} parent=23 // pred_region
          %s283 = ssub.s32 64, 64
          %284 = vsyncadd %s272, %s283
          %s285 = smul.addr %s24, 64
          %s286 = scalar_lea.hbm %s2, %s285
          %s288 = sshll.u32 %s275, 4
          %s289 = int_to_ptr.vmem [resolvable:$true] %s288
          %291 = dma.vmem_to_hbm [thread:$0]  %s289, 64, %s286, %s272
        $region40: #{tpu_custom_call.1} parent=23 // pred_fallthru
          _
      $region24: #{tpu_custom_call.1} parent=5 // pred_fallthru
        _
      %p292 = scmp.le.s32.totalorder 2, %s15
      // Predicated region
      $region41: #{tpu_custom_call.1} parent=5 // pred_check
        %p293 = pneg %p292
      $region42: #{tpu_custom_call.1} parent=5 // pred_check_branch
        %295 = sbr.rel (%p293) target = $region44
      $region43: #{tpu_custom_call.1} parent=5 // pred_region
        %s296 = ssub.s32 %s15, 2
        // Predicated region
        $region45: #{tpu_custom_call.1} parent=43 // pred_check
          %p297 = pneg %p84
        $region46: #{tpu_custom_call.1} parent=43 // pred_check_branch
          %299 = sbr.rel (%p297) target = $region48
        $region47: #{tpu_custom_call.1} parent=43 // pred_region
          %p300 = scmp.lt.s32.totalorder %s26, 1
          %s301 = scalar_select %p300, %s26, 1
          %s302 = smul.addr %s301, 4
          %s303 = scalar_lea.vmem %s1, %s302
        $region48: #{tpu_custom_call.1} parent=43 // pred_fallthru
          _
        // Predicated region
        $region49: #{tpu_custom_call.1} parent=43 // pred_check
          %p304 = pneg %p110
        $region50: #{tpu_custom_call.1} parent=43 // pred_check_branch
          %306 = sbr.rel (%p304) target = $region52
        $region51: #{tpu_custom_call.1} parent=43 // pred_region
          %s307 = sand.u32 %s95, 1
          %s308 = scalar_lea.sflag [#allocation4], %s307
          %s309 = sand.u32 %s95, 1
          %s310 = smul.addr %s309, 4
          %s311 = scalar_lea.vmem [#allocation5], %s310
          %312 = dma.done %s308, 64
        $region52: #{tpu_custom_call.1} parent=43 // pred_fallthru
          _
      $region44: #{tpu_custom_call.1} parent=5 // pred_fallthru
        _
    $region6: #{tpu_custom_call.1} parent=1 // loop_footer
      %s19 = sadd.s32 1, %s15
    $region7: #{tpu_custom_call.1} parent=1 // loop_footer_branch
      %14 = sbr.rel target = $region3
    $region8: #{tpu_custom_call.1} parent=1 // loop_exit
      _
    %313 = vsyncpa [#allocation3], 1
    %s314 = scalar_lea.sflag [#allocation3], 1
    %315 = vsyncpa %s314, 1
    %316 = vsyncpa [#allocation4], 1
    %s317 = scalar_lea.sflag [#allocation4], 1
    %318 = vsyncpa %s317, 1

</llo_original>
